<compile_context>
chip_gen: v5e
topology: v5e:2x2
jax: 0.10.0
libtpu: 0.0.40
codegen_flags: <defaults>
</compile_context>

<pallas_src>
import functools

import jax
import jax.numpy as jnp
from jax import lax
from jax.experimental import pallas as pl
from jax.experimental.pallas import tpu as pltpu

_LANES = 128
_SUBLANES = 8
_TOTAL_BLOCK_BYTES = 8 << 20     # ~8 MiB of HBM traffic per grid step (all streams)
_VMEM_SOFT_CAP = 40 << 20        # stay well under v7x's 64 MiB physical VMEM
_F32_TEMPS_PER_BLOCK = 3         # conservative count of materialized f32 block temps


# ---------------------------------------------------------------------------
# Planning helpers
# ---------------------------------------------------------------------------
def _vmem_budget_bytes():
    cap = _VMEM_SOFT_CAP
    try:
        info = pltpu.get_tpu_info()
        cap = min(cap, (int(info.vmem_capacity_bytes) * 6) // 10)
    except Exception:
        pass
    return cap


def _plan_block_rows(itemsize, n_streams):
    """Rows per (rows,128) block: dtype/stream-count aware, VMEM capped, mult of 8."""
    per_stream_bytes = _TOTAL_BLOCK_BYTES // n_streams
    rows = per_stream_bytes // (_LANES * itemsize)
    cap = _vmem_budget_bytes() - (2 << 20)
    per_row_bytes = n_streams * 2 * _LANES * itemsize + _F32_TEMPS_PER_BLOCK * _LANES * 4
    rows = min(rows, cap // per_row_bytes)
    rows = max(_SUBLANES, (rows // _SUBLANES) * _SUBLANES)
    return int(rows)


def _vmem_limit_bytes(block_rows, itemsize, n_streams):
    est = (n_streams * 2 * block_rows * _LANES * itemsize
           + _F32_TEMPS_PER_BLOCK * block_rows * _LANES * 4
           + (2 << 20))
    return int(max(est, 32 << 20))


def _as_slab(x, planned_rows):
    """Flatten to (rows, 128). Pads (zeros) only as much as alignment requires."""
    flat = x.reshape(-1)
    n = flat.shape[0]
    if pl.cdiv(n, _LANES) <= planned_rows:
        align = _SUBLANES * _LANES   # single full-extent block; rows % 8 == 0
    else:
        align = _LANES               # many blocks; ragged tail masked in-kernel
    pad = (-n) % align
    if pad:
        flat = jnp.pad(flat, (0, pad))
    rows = flat.shape[0] // _LANES
    return flat.reshape(rows, _LANES), n, rows


# ---------------------------------------------------------------------------
# Reduction kernels (accumulate into an (8,128) vreg-shaped VMEM-resident out,
# one accumulator block per core-split)
# ---------------------------------------------------------------------------
def _accumulate(acc_ref, v, gb, *, rows_total, block_rows, mask_start_block, need_mask):
    def _full():
        acc_ref[...] += v.reshape(block_rows // _SUBLANES, _SUBLANES, _LANES).sum(axis=0)

    if not need_mask:
        _full()
        return

    @pl.when(gb < mask_start_block)
    def _():
        _full()

    @pl.when(gb >= mask_start_block)
    def _():
        row_ids = gb * block_rows + lax.broadcasted_iota(jnp.int32, v.shape, 0)
        vm = jnp.where(row_ids < rows_total, v, 0.0)
        acc_ref[...] += vm.reshape(block_rows // _SUBLANES, _SUBLANES, _LANES).sum(axis=0)


def _sum_kernel(p_ref, t_ref, acc_ref, *, rows_total, block_rows,
                blocks_per_split, mask_start_block, need_mask):
    c = pl.program_id(0)
    i = pl.program_id(1)

    @pl.when(i == 0)
    def _():
        acc_ref[...] = jnp.zeros_like(acc_ref)

    d = jnp.abs(p_ref[...].astype(jnp.float32) - t_ref[...].astype(jnp.float32))
    gb = c * blocks_per_split + i
    _accumulate(acc_ref, d, gb, rows_total=rows_total, block_rows=block_rows,
                mask_start_block=mask_start_block, need_mask=need_mask)


def _sum_w_kernel(p_ref, t_ref, w_ref, *out_refs, rows_total, block_rows,
                  blocks_per_split, mask_start_block, need_mask):
    acc_ref = out_refs[0]
    wsum_ref = out_refs[1] if len(out_refs) > 1 else None
    c = pl.program_id(0)
    i = pl.program_id(1)

    @pl.when(i == 0)
    def _():
        acc_ref[...] = jnp.zeros_like(acc_ref)
        if wsum_ref is not None:
            wsum_ref[...] = jnp.zeros_like(wsum_ref)

    p = p_ref[...].astype(jnp.float32)
    t = t_ref[...].astype(jnp.float32)
    w = w_ref[...].astype(jnp.float32)
    d = jnp.abs(p - t) * w
    gb = c * blocks_per_split + i
    _accumulate(acc_ref, d, gb, rows_total=rows_total, block_rows=block_rows,
                mask_start_block=mask_start_block, need_mask=need_mask)
    if wsum_ref is not None:
        _accumulate(wsum_ref, w, gb, rows_total=rows_total, block_rows=block_rows,
                    mask_start_block=mask_start_block, need_mask=need_mask)


# ---------------------------------------------------------------------------
# Elementwise ('none') kernels — loss_weight fused in at trace time
# ---------------------------------------------------------------------------
def _make_elem_kernel(loss_weight, weighted):
    lw = None if float(loss_weight) == 1.0 else float(loss_weight)

    if weighted:
        def kernel(p_ref, t_ref, w_ref, o_ref):
            r = jnp.abs(p_ref[...] - t_ref[...]) * w_ref[...]
            if lw is not None:
                r = r * jnp.asarray(lw, dtype=r.dtype)
            o_ref[...] = r.astype(o_ref.dtype)
    else:
        def kernel(p_ref, t_ref, o_ref):
            r = jnp.abs(p_ref[...] - t_ref[...])
            if lw is not None:
                r = r * jnp.asarray(lw, dtype=r.dtype)
            o_ref[...] = r.astype(o_ref.dtype)

    return kernel


# ---------------------------------------------------------------------------
# Pallas wrappers
# ---------------------------------------------------------------------------
def _l1_reduce_sums(pred, target, weight, need_wsum):
    """Returns (sum(|p-t| [*w]), sum(w) or None) as f32 scalars."""
    itemsize = int(jnp.dtype(pred.dtype).itemsize)
    n_streams = 2 if weight is None else 3
    br = _plan_block_rows(itemsize, n_streams)

    p2, _, rows = _as_slab(pred, br)
    t2 = _as_slab(target, br)[0]
    w2 = _as_slab(weight, br)[0] if weight is not None else None

    br = min(br, rows)
    num_blocks = pl.cdiv(rows, br)
    n_split = 2 if num_blocks >= 2 else 1        # engage both v7x TensorCores
    bpc = pl.cdiv(num_blocks, n_split)
    ragged = (rows % br) != 0
    mask_start_block = num_blocks - 1 if ragged else num_blocks
    need_mask = (n_split * bpc - 1) >= mask_start_block

    in_spec = pl.BlockSpec(
        (br, _LANES), lambda c, i: (jnp.minimum(c * bpc + i, num_blocks - 1), 0))
    acc_spec = pl.BlockSpec((_SUBLANES, _LANES), lambda c, i: (c, 0))
    acc_shape = jax.ShapeDtypeStruct((n_split * _SUBLANES, _LANES), jnp.float32)

    kernel_kwargs = dict(rows_total=rows, block_rows=br, blocks_per_split=bpc,
                         mask_start_block=mask_start_block, need_mask=need_mask)

    if w2 is None:
        kernel = functools.partial(_sum_kernel, **kernel_kwargs)
        operands = (p2, t2)
        out_shape = acc_shape
        out_specs = acc_spec
    else:
        kernel = functools.partial(_sum_w_kernel, **kernel_kwargs)
        operands = (p2, t2, w2)
        if need_wsum:
            out_shape = (acc_shape, acc_shape)
            out_specs = (acc_spec, acc_spec)
        else:
            out_shape = acc_shape
            out_specs = acc_spec

    n_elems = rows * _LANES
    bytes_accessed = sum(int(op.dtype.itemsize) for op in operands) * n_elems
    flops = (3 if w2 is None else 6) * n_elems

    out = pl.pallas_call(
        kernel,
        out_shape=out_shape,
        grid=(n_split, bpc),
        in_specs=[in_spec] * len(operands),
        out_specs=out_specs,
        compiler_params=pltpu.CompilerParams(
            dimension_semantics=("parallel", "arbitrary"),
            vmem_limit_bytes=_vmem_limit_bytes(br, itemsize, n_streams)),
        cost_estimate=pl.CostEstimate(
            flops=flops, transcendentals=0, bytes_accessed=bytes_accessed),
    )(*operands)

    if w2 is None:
        return jnp.sum(out), None
    if need_wsum:
        return jnp.sum(out[0]), jnp.sum(out[1])
    return jnp.sum(out), None


def _l1_elementwise(pred, target, weight, loss_weight, out_dtype):
    itemsize = int(jnp.dtype(pred.dtype).itemsize)
    n_streams = 3 if weight is None else 4       # inputs + output stream
    br = _plan_block_rows(itemsize, n_streams)

    p2, n, rows = _as_slab(pred, br)
    t2 = _as_slab(target, br)[0]
    w2 = _as_slab(weight, br)[0] if weight is not None else None

    br = min(br, rows)
    num_blocks = pl.cdiv(rows, br)

    spec = pl.BlockSpec((br, _LANES), lambda i: (i, 0))
    operands = (p2, t2) if w2 is None else (p2, t2, w2)
    kernel = _make_elem_kernel(loss_weight, weighted=w2 is not None)
    n_elems = rows * _LANES
    bytes_accessed = (sum(int(op.dtype.itemsize) for op in operands)
                      + int(jnp.dtype(out_dtype).itemsize)) * n_elems

    o2 = pl.pallas_call(
        kernel,
        out_shape=jax.ShapeDtypeStruct((rows, _LANES), out_dtype),
        grid=(num_blocks,),
        in_specs=[spec] * len(operands),
        out_specs=spec,
        compiler_params=pltpu.CompilerParams(
            dimension_semantics=("parallel",),
            vmem_limit_bytes=_vmem_limit_bytes(br, itemsize, n_streams)),
        cost_estimate=pl.CostEstimate(
            flops=3 * n_elems, transcendentals=0, bytes_accessed=bytes_accessed),
    )(*operands)
    return o2, n, rows


# ---------------------------------------------------------------------------
# Module equivalent
# ---------------------------------------------------------------------------
class L1Loss:
    """L1 (MAE) loss matching HINet's L1Loss semantics (basicsr weighted_loss)."""

    def __init__(self, loss_weight=1.0, reduction="mean"):
        if reduction not in ("none", "mean", "sum"):
            raise ValueError(
                f"Unsupported reduction mode: {reduction}. "
                f"Supported ones are: ['none', 'mean', 'sum']"
            )
        self.loss_weight = loss_weight
        self.reduction = reduction

    def __call__(self, pred, target, weight=None):
        out_dtype = pred.dtype

        if weight is not None and weight.shape != pred.shape:
            # TODO(synk): stream the small (e.g. (N,1,H,W)) weight via its own
            # BlockSpec instead of materializing a pred-sized broadcast in HBM.
            weight = jnp.broadcast_to(weight, pred.shape)

        n = pred.size

        if self.reduction == "none":
            o2, n, rows = _l1_elementwise(pred, target, weight,
                                          self.loss_weight, out_dtype)
            if rows * _LANES == n:
                return o2.reshape(pred.shape)          # free reshape, no copy
            return o2.reshape(-1)[:n].reshape(pred.shape)

        loss_sum, weight_sum = _l1_reduce_sums(
            pred, target, weight,
            need_wsum=(self.reduction == "mean" and weight is not None))

        if self.reduction == "sum":
            out = loss_sum
        else:  # 'mean'
            if weight is None:
                out = loss_sum / jnp.float32(n)
            else:
                out = loss_sum / weight_sum
        return (self.loss_weight * out).astype(out_dtype)


# ---------------------------------------------------------------------------
if __name__ == "__main__":
    key = jax.random.PRNGKey(0)
    k1, k2, k3 = jax.random.split(key, 3)
    N, C, H, W = 2, 4, 16, 16  # NCHW, same convention as PyTorch
    pred = jax.random.normal(k1, (N, C, H, W), dtype=jnp.float32)
    target = jax.random.normal(k2, (N, C, H, W), dtype=jnp.float32)
    weight = jax.random.uniform(k3, (N, C, H, W), dtype=jnp.float32)

    # mean
    loss = L1Loss(loss_weight=1.0, reduction="mean")(pred, target)
    jax.block_until_ready(loss)
    ref = jnp.mean(jnp.abs(pred - target))
    assert jnp.allclose(loss, ref, rtol=1e-6, atol=1e-6), (loss, ref)

    # sum
    loss_sum = L1Loss(reduction="sum")(pred, target)
    jax.block_until_ready(loss_sum)
    assert jnp.allclose(loss_sum, jnp.sum(jnp.abs(pred - target)), rtol=1e-5)

    # weighted sum (no weight-sum accumulator path)
    loss_wsum = L1Loss(reduction="sum")(pred, target, weight)
    jax.block_until_ready(loss_wsum)
    assert jnp.allclose(loss_wsum, jnp.sum(jnp.abs(pred - target) * weight), rtol=1e-5)

    # none (weighted, loss_weight fused)
    loss_none = L1Loss(loss_weight=0.5, reduction="none")(pred, target, weight)
    jax.block_until_ready(loss_none)
    ref_none = 0.5 * jnp.abs(pred - target) * weight
    assert loss_none.shape == pred.shape
    assert jnp.allclose(loss_none, ref_none, rtol=1e-6, atol=1e-6)

    # weighted mean (fused sum(weight) denominator)
    loss_wmean = L1Loss(reduction="mean")(pred, target, weight)
    jax.block_until_ready(loss_wmean)
    ref_wmean = jnp.sum(jnp.abs(pred - target) * weight) / jnp.sum(weight)
    assert jnp.allclose(loss_wmean, ref_wmean, rtol=1e-5, atol=1e-6)

    # mid-size input that exercises the 2-way core split + ragged-tail mask
    km1, km2, km3 = jax.random.split(jax.random.PRNGKey(1), 3)
    pm = jax.random.normal(km1, (2, 4, 300, 512), dtype=jnp.float32)
    tm = jax.random.normal(km2, (2, 4, 300, 512), dtype=jnp.float32)
    wm = jax.random.uniform(km3, (2, 4, 300, 512), dtype=jnp.float32)
    lm = L1Loss(reduction="mean")(pm, tm)
    jax.block_until_ready(lm)
    assert jnp.allclose(lm, jnp.mean(jnp.abs(pm - tm)), rtol=1e-5, atol=1e-6)
    lwm = L1Loss(reduction="mean")(pm, tm, wm)
    jax.block_until_ready(lwm)
    ref_lwm = jnp.sum(jnp.abs(pm - tm) * wm) / jnp.sum(wm)
    assert jnp.allclose(lwm, ref_lwm, rtol=1e-5, atol=1e-6)

    print("KERNEL_OK")
</pallas_src>

<mosaic_0001>
module attributes {stable_mosaic.version = 11 : i64} {
  func.func @_sum_kernel(%arg0: i32, %arg1: i32, %arg2: memref<16x128xf32, #tpu.memory_space<vmem>>, %arg3: memref<16x128xf32, #tpu.memory_space<vmem>>, %arg4: memref<8x128xf32, #tpu.memory_space<vmem>>) attributes {dimension_semantics = [#tpu.dimension_semantics<parallel>, #tpu.dimension_semantics<arbitrary>], iteration_bounds = array<i64: 1, 1>, scalar_prefetch = 0 : i64, scratch_operands = 0 : i64, tpu.core_type = #tpu.core_type<tc>, window_params = [{transform_indices = @transform_0, window_bounds = array<i64: 16, 128>}, {transform_indices = @transform_1, window_bounds = array<i64: 16, 128>}, {transform_indices = @transform_2, window_bounds = array<i64: 8, 128>}]} {
    %c0_i32 = arith.constant 0 : i32
    %0 = arith.cmpi eq, %arg1, %c0_i32 : i32
    %1 = arith.extui %0 : i1 to i32
    %c0_i32_0 = arith.constant 0 : i32
    %2 = arith.cmpi ne, %1, %c0_i32_0 : i32
    scf.if %2 {
      %cst_8 = arith.constant 0.000000e+00 : f32
      %12 = vector.broadcast %cst_8 : f32 to vector<8x128xf32>
      %c0_9 = arith.constant 0 : index
      %c0_10 = arith.constant 0 : index
      %13 = vector.load %arg4[%c0_9, %c0_10] : memref<8x128xf32, #tpu.memory_space<vmem>>, vector<8x128xf32>
      tpu.vector_store %arg4[%c0_9, %c0_10], %12 {strides = array<i32>} : memref<8x128xf32, #tpu.memory_space<vmem>>, vector<8x128xf32>,
    } else {
    }
    %c0 = arith.constant 0 : index
    %c0_1 = arith.constant 0 : index
    %3 = vector.load %arg2[%c0, %c0_1] : memref<16x128xf32, #tpu.memory_space<vmem>>, vector<16x128xf32>
    %c0_2 = arith.constant 0 : index
    %c0_3 = arith.constant 0 : index
    %4 = vector.load %arg3[%c0_2, %c0_3] : memref<16x128xf32, #tpu.memory_space<vmem>>, vector<16x128xf32>
    %5 = arith.subf %3, %4 : vector<16x128xf32>
    %6 = math.absf %5 : vector<16x128xf32>
    %c0_4 = arith.constant 0 : index
    %c0_5 = arith.constant 0 : index
    %7 = vector.load %arg4[%c0_4, %c0_5] : memref<8x128xf32, #tpu.memory_space<vmem>>, vector<8x128xf32>
    %8 = vector.shape_cast %6 : vector<16x128xf32> to vector<2x8x128xf32>
    %cst = arith.constant dense<0.000000e+00> : vector<8x128xf32>
    %9 = vector.multi_reduction <add>, %8, %cst [0] : vector<2x8x128xf32> to vector<8x128xf32>
    %10 = arith.addf %7, %9 : vector<8x128xf32>
    %c0_6 = arith.constant 0 : index
    %c0_7 = arith.constant 0 : index
    %11 = vector.load %arg4[%c0_6, %c0_7] : memref<8x128xf32, #tpu.memory_space<vmem>>, vector<8x128xf32>
    tpu.vector_store %arg4[%c0_6, %c0_7], %10 {strides = array<i32>} : memref<8x128xf32, #tpu.memory_space<vmem>>, vector<8x128xf32>,
    return
  }
  func.func @transform_0(%arg0: i32, %arg1: i32) -> (i32, i32) {
    %c1_i32 = arith.constant 1 : i32
    %0 = arith.muli %arg0, %c1_i32 : i32
    %1 = arith.addi %0, %arg1 : i32
    %c0_i32 = arith.constant 0 : i32
    %2 = arith.minsi %1, %c0_i32 : i32
    %c0_i32_0 = arith.constant 0 : i32
    %c0_i32_1 = arith.constant 0 : i32
    return %2, %c0_i32_0 : i32, i32
  }
  func.func @transform_1(%arg0: i32, %arg1: i32) -> (i32, i32) {
    %c1_i32 = arith.constant 1 : i32
    %0 = arith.muli %arg0, %c1_i32 : i32
    %1 = arith.addi %0, %arg1 : i32
    %c0_i32 = arith.constant 0 : i32
    %2 = arith.minsi %1, %c0_i32 : i32
    %c0_i32_0 = arith.constant 0 : i32
    %c0_i32_1 = arith.constant 0 : i32
    return %2, %c0_i32_0 : i32, i32
  }
  func.func @transform_2(%arg0: i32, %arg1: i32) -> (i32, i32) {
    %c0_i32 = arith.constant 0 : i32
    %c0_i32_0 = arith.constant 0 : i32
    return %arg0, %c0_i32 : i32, i32
  }
}

</mosaic_0001>

<llo_original>
// kernel: tpu_custom_call.1
$region0: #{tpu_custom_call.1}
  #allocation0 [shape = 'u32[]', space=smem, size = 0x4, offset = 0x4, fixed_abs, tag = 'smem constant byte address 0x4 - core index']
  #allocation1 [shape = 'u32[72,128]{1,0:T(1,128)}', space=vmem, size = 0x9000, scoped, tag = 'internal scratch']
  %s0 = inlined_call_operand.hbm [shape: f32[16,128], index: 0, kind: input, shape index: {}]
  %s1 = inlined_call_operand.hbm [shape: f32[16,128], index: 1, kind: input, shape index: {}]
  %s2 = inlined_call_operand.hbm [shape: f32[8,128], index: 2, kind: output, shape index: {}]
  %s3 = sld [smem:[#allocation0]]
  $region30: #{tpu_custom_call.1} parent=0
    _
  %s5 = ssub.s32 1, %s3
  %s6 = scalar_select 0, %s5, %s3
  $region1: #{tpu_custom_call.1} parent=0
    #allocation2 [shape = 'u8[8192]{0}', space=vmem, size = 0x2000, scoped, tag = 'input window, operand 0, single buffered']
    #allocation3 [shape = 's32[1]{0}', space=sflag, size = 0x4, scoped, tag = 'scoped memory for tpu_custom_call.1']
    #allocation4 [shape = 's32[1]{0}', space=sflag, size = 0x4, scoped, tag = 'scoped memory for tpu_custom_call.1']
    #allocation5 [shape = 'u8[8192]{0}', space=vmem, size = 0x2000, scoped, tag = 'input window, operand 1, single buffered']
    #allocation6 [shape = 's32[1]{0}', space=sflag, size = 0x4, scoped, tag = 'scoped memory for tpu_custom_call.1']
    #allocation7 [shape = 'u8[4096]{0}', space=vmem, size = 0x1000, scoped, tag = 'output window, operand 0, single buffered']
    %7 = vsyncpa [#allocation3], 0
    %8 = vsyncpa [#allocation6], 0
    %9 = vsyncpa [#allocation4], 0
    // Predicated region
    $region2: #{tpu_custom_call.1} parent=1 // pred_check
      _
    $region3: #{tpu_custom_call.1} parent=1 // pred_check_branch
      %11 = sbr.rel (0) target = $region5
    $region4: #{tpu_custom_call.1} parent=1 // pred_region
      %s12 = sadd.s32 0, 0
      %p13 = scmp.lt.s32.totalorder %s12, 0
      %s14 = scalar_select %p13, %s12, 0
      %s15 = smul.u32 2, %s14
      %17 = vsyncadd [#allocation3], 0
      %s18 = smul.addr %s15, 8
      %s19 = scalar_lea.hbm %s0, %s18
      %s20 = sshll.u32 %s19, 4
      %s21 = int_to_ptr.hbm [resolvable:$true] %s20
      %s22 = sshll.u32 [#allocation2], 4
      %s23 = int_to_ptr.vmem [resolvable:$true] %s22
      %28 = dma.hbm_to_vmem [thread:$0]  %s21, 256, %s23, [#allocation3], 128, 128, 8
    $region5: #{tpu_custom_call.1} parent=1 // pred_fallthru
      _
    // Predicated region
    $region6: #{tpu_custom_call.1} parent=1 // pred_check
      _
    $region7: #{tpu_custom_call.1} parent=1 // pred_check_branch
      %30 = sbr.rel (0) target = $region9
    $region8: #{tpu_custom_call.1} parent=1 // pred_region
      %s31 = sadd.s32 0, 0
      %p32 = scmp.lt.s32.totalorder %s31, 0
      %s33 = scalar_select %p32, %s31, 0
      %s34 = smul.u32 2, %s33
      %36 = vsyncadd [#allocation6], 0
      %s37 = smul.addr %s34, 8
      %s38 = scalar_lea.hbm %s1, %s37
      %s39 = sshll.u32 %s38, 4
      %s40 = int_to_ptr.hbm [resolvable:$true] %s39
      %s41 = sshll.u32 [#allocation5], 4
      %s42 = int_to_ptr.vmem [resolvable:$true] %s41
      %47 = dma.hbm_to_vmem [thread:$0]  %s40, 256, %s42, [#allocation6], 128, 128, 8
    $region9: #{tpu_custom_call.1} parent=1 // pred_fallthru
      _
    // Predicated region
    $region10: #{tpu_custom_call.1} parent=1 // pred_check
      _
    $region11: #{tpu_custom_call.1} parent=1 // pred_check_branch
      %49 = sbr.rel (0) target = $region13
    $region12: #{tpu_custom_call.1} parent=1 // pred_region
      %51 = dma.done [#allocation3], 256
    $region13: #{tpu_custom_call.1} parent=1 // pred_fallthru
      _
    // Predicated region
    $region14: #{tpu_custom_call.1} parent=1 // pred_check
      _
    $region15: #{tpu_custom_call.1} parent=1 // pred_check_branch
      %53 = sbr.rel (0) target = $region17
    $region16: #{tpu_custom_call.1} parent=1 // pred_region
      %55 = dma.done [#allocation6], 256
    $region17: #{tpu_custom_call.1} parent=1 // pred_fallthru
      _
    %s56 = sadd.s32 0, 0
    %p57 = scmp.lt.s32.totalorder %s56, 0
    %s58 = scalar_select %p57, %s56, 0
    %s59 = smul.u32 2, %s58
    %s60 = sadd.s32 0, 0
    %p61 = scmp.lt.s32.totalorder %s60, 0
    %s62 = scalar_select %p61, %s60, 0
    %s63 = smul.u32 2, %s62
    %p64 = scmp.eq.s32.totalorder 0, 0
    // Predicated region
    $region18: #{tpu_custom_call.1} parent=1 // pred_check
      %p65 = pneg %p64
    $region19: #{tpu_custom_call.1} parent=1 // pred_check_branch
      %67 = sbr.rel (%p65) target = $region21
    $region20: #{tpu_custom_call.1} parent=1 // pred_region
      %68 = vst [vmem:[#allocation7] sm:$0xff] 0.0
    $region21: #{tpu_custom_call.1} parent=1 // pred_fallthru
      _
    %v69 = vld [vmem:[#allocation2] sm:$0xff]
    %v70 = vld [vmem:[#allocation2 + $0x8] sm:$0xff]
    %v71 = vld [vmem:[#allocation5] sm:$0xff]
    %v72 = vld [vmem:[#allocation5 + $0x8] sm:$0xff]
    %v73 = vsub.f32 %v69, %v71
    %v74 = vsub.f32 %v70, %v72
    %v75 = vand.u32 2147483647, %v73
    %v76 = vand.u32 2147483647, %v74
    %v77 = vld [vmem:[#allocation7] sm:$0xff]
    %v78 = vadd.f32 %v75, %v76
    %v79 = vadd.f32 %v77, %v78
    %80 = vst [vmem:[#allocation7] sm:$0xff] %v79
    // Predicated region
    $region22: #{tpu_custom_call.1} parent=1 // pred_check
      _
    $region23: #{tpu_custom_call.1} parent=1 // pred_check_branch
      %82 = sbr.rel (0) target = $region25
    $region24: #{tpu_custom_call.1} parent=1 // pred_region
      %84 = vsyncadd [#allocation4], 0
      %s86 = sshll.u32 [#allocation7], 4
      %s87 = int_to_ptr.vmem [resolvable:$true] %s86
      %s88 = sshll.u32 %s2, 4
      %s89 = int_to_ptr.hbm [resolvable:$true] %s88
      %91 = dma.vmem_to_hbm [thread:$0]  %s87, 128, %s89, [#allocation4]
    $region25: #{tpu_custom_call.1} parent=1 // pred_fallthru
      _
    // Predicated region
    $region26: #{tpu_custom_call.1} parent=1 // pred_check
      _
    $region27: #{tpu_custom_call.1} parent=1 // pred_check_branch
      %93 = sbr.rel (0) target = $region29
    $region28: #{tpu_custom_call.1} parent=1 // pred_region
      %95 = dma.done [#allocation4], 128
    $region29: #{tpu_custom_call.1} parent=1 // pred_fallthru
      _
    %96 = vsyncpa [#allocation3], 1
    %97 = vsyncpa [#allocation6], 1
    %98 = vsyncpa [#allocation4], 1

</llo_original>
